<compile_context>
chip_gen: v7x
topology: tpu7x:2x2x1
jax: 0.10.0
libtpu: 0.0.40
codegen_flags: <defaults>
</compile_context>

<pallas_src>
import functools

import jax
import jax.numpy as jnp
from jax.experimental import pallas as pl
from jax.experimental.pallas import tpu as pltpu

LANE = 128
SUBLANE = 8


def decoder_kernel(x_ref, w1_ref, b1_ref, w2_ref, b2_ref, w3_ref, b3_ref, o_ref):
    # Layer 1: Linear(64, 128) + Tanh  (f32 accumulate, f32 element-wise)
    h1 = jnp.dot(x_ref[...], w1_ref[...], preferred_element_type=jnp.float32)
    h1 = jnp.tanh(h1 + b1_ref[...])

    # Layer 2: Linear(128, 256) + Tanh
    h2 = jnp.dot(h1.astype(w2_ref.dtype), w2_ref[...],
                 preferred_element_type=jnp.float32)
    h2 = jnp.tanh(h2 + b2_ref[...])

    # Layer 3: Linear(256, 1152-padded) + Sigmoid (padded columns sliced off in wrapper)
    h3 = jnp.dot(h2.astype(w3_ref.dtype), w3_ref[...],
                 preferred_element_type=jnp.float32)
    o_ref[...] = jax.nn.sigmoid(h3 + b3_ref[...]).astype(o_ref.dtype)


def _round_up(x, m):
    return ((x + m - 1) // m) * m


@functools.partial(jax.jit, static_argnames=("tile_b", "use_bf16"))
def decoder_forward(x, params, *, tile_b=512, use_bf16=False):
    """Fused decoder forward. x: (B, 64) f32. Returns (B, 1025) f32."""
    w1, b1, w2, b2, w3, b3 = params
    B, K = x.shape
    out_dim = w3.shape[1]                      # 1025
    n_pad = _round_up(out_dim, LANE)           # 1152

    # Zero-pad layer-3 weight/bias to a lane multiple -> lane-dense output stores.
    if n_pad != out_dim:
        w3 = jnp.pad(w3, ((0, 0), (0, n_pad - out_dim)))
        b3 = jnp.pad(b3, ((0, 0), (0, n_pad - out_dim)))

    # Batch tile: multiple of 8 sublanes, capped at tile_b; pad batch to a tile multiple.
    tb = min(_round_up(tile_b, SUBLANE), max(SUBLANE, _round_up(B, SUBLANE)))
    b_pad = _round_up(B, tb)
    if b_pad != B:
        x = jnp.pad(x, ((0, b_pad - B), (0, 0)))

    # Optional bf16 matmul operands (v6e/v7x); biases + element-wise math stay f32.
    compute_dtype = jnp.bfloat16 if use_bf16 else x.dtype
    x = x.astype(compute_dtype)
    w1, w2, w3 = (w.astype(compute_dtype) for w in (w1, w2, w3))

    grid = (b_pad // tb,)

    x_spec = pl.BlockSpec((tb, K), lambda i: (i, 0))
    out_spec = pl.BlockSpec((tb, n_pad), lambda i: (i, 0))

    def resident(arr):  # full-array block, constant index -> fetched once, stays in VMEM
        return pl.BlockSpec(arr.shape, lambda i: (0, 0))

    itemsize = lambda a: a.size * a.dtype.itemsize
    cost = pl.CostEstimate(
        flops=2 * b_pad * (64 * 128 + 128 * 256 + 256 * n_pad),
        transcendentals=b_pad * (128 + 256 + n_pad),
        bytes_accessed=(itemsize(x) + b_pad * n_pad * 4
                        + sum(itemsize(a) for a in (w1, b1, w2, b2, w3, b3))),
    )

    out = pl.pallas_call(
        decoder_kernel,
        out_shape=jax.ShapeDtypeStruct((b_pad, n_pad), jnp.float32),
        grid_spec=pltpu.PrefetchScalarGridSpec(
            num_scalar_prefetch=0,
            grid=grid,
            in_specs=[
                x_spec,
                resident(w1), resident(b1),
                resident(w2), resident(b2),
                resident(w3), resident(b3),
            ],
            out_specs=out_spec,
        ),
        compiler_params=pltpu.CompilerParams(
            dimension_semantics=("parallel",),
            vmem_limit_bytes=64 * 1024 * 1024,
        ),
        cost_estimate=cost,
    )(x, w1, b1, w2, b2, w3, b3)

    return out[:B, :out_dim]


def init_params(key):
    """Mimics PyTorch's default Linear init: U[-1/sqrt(fan_in), +1/sqrt(fan_in)]."""
    def linear(key, fan_in, fan_out):
        kw, kb = jax.random.split(key)
        bound = 1.0 / jnp.sqrt(fan_in)
        w = jax.random.uniform(kw, (fan_in, fan_out), jnp.float32, -bound, bound)
        b = jax.random.uniform(kb, (1, fan_out), jnp.float32, -bound, bound)
        return w, b

    k1, k2, k3 = jax.random.split(key, 3)
    w1, b1 = linear(k1, 64, 128)
    w2, b2 = linear(k2, 128, 256)
    w3, b3 = linear(k3, 256, 1025)
    return (w1, b1, w2, b2, w3, b3)


def _reference(x, params):
    w1, b1, w2, b2, w3, b3 = params
    h = jnp.tanh(x @ w1 + b1)
    h = jnp.tanh(h @ w2 + b2)
    return jax.nn.sigmoid(h @ w3 + b3)


if __name__ == "__main__":
    key = jax.random.PRNGKey(0)
    k_params, k_x1, k_x2 = jax.random.split(key, 3)
    params = init_params(k_params)

    # Small batch (single grid step).
    x_small = jax.random.normal(k_x1, (8, 64), jnp.float32)
    out_small = jax.block_until_ready(decoder_forward(x_small, params))
    assert out_small.shape == (8, 1025)
    assert jnp.allclose(out_small, _reference(x_small, params), atol=1e-5, rtol=1e-5)

    # Ragged batch (exercises batch padding + multi-step grid with resident weights).
    x_big = jax.random.normal(k_x2, (200, 64), jnp.float32)
    out_big = jax.block_until_ready(decoder_forward(x_big, params, tile_b=64))
    assert out_big.shape == (200, 1025)
    assert jnp.allclose(out_big, _reference(x_big, params), atol=1e-5, rtol=1e-5)

    print("KERNEL_OK")
</pallas_src>

<mosaic_0001>
module attributes {stable_mosaic.version = 11 : i64} {
  func.func @decoder_kernel(%arg0: i32, %arg1: memref<8x64xf32, #tpu.memory_space<vmem>>, %arg2: memref<64x128xf32, #tpu.memory_space<vmem>>, %arg3: memref<1x128xf32, #tpu.memory_space<vmem>>, %arg4: memref<128x256xf32, #tpu.memory_space<vmem>>, %arg5: memref<1x256xf32, #tpu.memory_space<vmem>>, %arg6: memref<256x1152xf32, #tpu.memory_space<vmem>>, %arg7: memref<1x1152xf32, #tpu.memory_space<vmem>>, %arg8: memref<8x1152xf32, #tpu.memory_space<vmem>>) attributes {dimension_semantics = [#tpu.dimension_semantics<parallel>], iteration_bounds = array<i64: 1>, scalar_prefetch = 0 : i64, scratch_operands = 0 : i64, tpu.core_type = #tpu.core_type<tc>, window_params = [{transform_indices = @transform_0, window_bounds = array<i64: 8, 64>}, {pipeline_mode = #tpu.pipeline_mode<synchronous>, transform_indices = @transform_1, window_bounds = array<i64: 64, 128>}, {pipeline_mode = #tpu.pipeline_mode<synchronous>, transform_indices = @transform_2, window_bounds = array<i64: 1, 128>}, {pipeline_mode = #tpu.pipeline_mode<synchronous>, transform_indices = @transform_3, window_bounds = array<i64: 128, 256>}, {pipeline_mode = #tpu.pipeline_mode<synchronous>, transform_indices = @transform_4, window_bounds = array<i64: 1, 256>}, {pipeline_mode = #tpu.pipeline_mode<synchronous>, transform_indices = @transform_5, window_bounds = array<i64: 256, 1152>}, {pipeline_mode = #tpu.pipeline_mode<synchronous>, transform_indices = @transform_6, window_bounds = array<i64: 1, 1152>}, {transform_indices = @transform_7, window_bounds = array<i64: 8, 1152>}]} {
    %c0 = arith.constant 0 : index
    %c0_0 = arith.constant 0 : index
    %0 = vector.load %arg1[%c0, %c0_0] : memref<8x64xf32, #tpu.memory_space<vmem>>, vector<8x64xf32>
    %c0_1 = arith.constant 0 : index
    %c0_2 = arith.constant 0 : index
    %1 = vector.load %arg2[%c0_1, %c0_2] : memref<64x128xf32, #tpu.memory_space<vmem>>, vector<64x128xf32>
    %cst = arith.constant dense<0.000000e+00> : vector<8x128xf32>
    %2 = tpu.matmul %0, %1, %cst {dimension_numbers = #tpu.dot_dimension_numbers<[1], [0], [0], [1], [0, 0, 1, 1], [], []>} : vector<8x64xf32>, vector<64x128xf32>, vector<8x128xf32> -> vector<8x128xf32>
    %c0_3 = arith.constant 0 : index
    %c0_4 = arith.constant 0 : index
    %3 = vector.load %arg3[%c0_3, %c0_4] : memref<1x128xf32, #tpu.memory_space<vmem>>, vector<1x128xf32>
    %4 = vector.broadcast %3 : vector<1x128xf32> to vector<8x128xf32>
    %5 = arith.addf %2, %4 : vector<8x128xf32>
    %6 = math.tanh %5 : vector<8x128xf32>
    %c0_5 = arith.constant 0 : index
    %c0_6 = arith.constant 0 : index
    %7 = vector.load %arg4[%c0_5, %c0_6] : memref<128x256xf32, #tpu.memory_space<vmem>>, vector<128x256xf32>
    %cst_7 = arith.constant dense<0.000000e+00> : vector<8x256xf32>
    %8 = tpu.matmul %6, %7, %cst_7 {dimension_numbers = #tpu.dot_dimension_numbers<[1], [0], [0], [1], [0, 0, 1, 1], [], []>} : vector<8x128xf32>, vector<128x256xf32>, vector<8x256xf32> -> vector<8x256xf32>
    %c0_8 = arith.constant 0 : index
    %c0_9 = arith.constant 0 : index
    %9 = vector.load %arg5[%c0_8, %c0_9] : memref<1x256xf32, #tpu.memory_space<vmem>>, vector<1x256xf32>
    %10 = vector.broadcast %9 : vector<1x256xf32> to vector<8x256xf32>
    %11 = arith.addf %8, %10 : vector<8x256xf32>
    %12 = math.tanh %11 : vector<8x256xf32>
    %c0_10 = arith.constant 0 : index
    %c0_11 = arith.constant 0 : index
    %13 = vector.load %arg6[%c0_10, %c0_11] : memref<256x1152xf32, #tpu.memory_space<vmem>>, vector<256x1152xf32>
    %cst_12 = arith.constant dense<0.000000e+00> : vector<8x1152xf32>
    %14 = tpu.matmul %12, %13, %cst_12 {dimension_numbers = #tpu.dot_dimension_numbers<[1], [0], [0], [1], [0, 0, 1, 1], [], []>} : vector<8x256xf32>, vector<256x1152xf32>, vector<8x1152xf32> -> vector<8x1152xf32>
    %c0_13 = arith.constant 0 : index
    %c0_14 = arith.constant 0 : index
    %15 = vector.load %arg7[%c0_13, %c0_14] : memref<1x1152xf32, #tpu.memory_space<vmem>>, vector<1x1152xf32>
    %16 = vector.broadcast %15 : vector<1x1152xf32> to vector<8x1152xf32>
    %17 = arith.addf %14, %16 : vector<8x1152xf32>
    %18 = arith.negf %17 : vector<8x1152xf32>
    %19 = math.exp %18 : vector<8x1152xf32>
    %cst_15 = arith.constant 1.000000e+00 : f32
    %20 = vector.broadcast %cst_15 : f32 to vector<8x1152xf32>
    %21 = arith.addf %20, %19 : vector<8x1152xf32>
    %22 = arith.divf %20, %21 : vector<8x1152xf32>
    %c0_16 = arith.constant 0 : index
    %c0_17 = arith.constant 0 : index
    %23 = vector.load %arg8[%c0_16, %c0_17] : memref<8x1152xf32, #tpu.memory_space<vmem>>, vector<8x1152xf32>
    tpu.vector_store %arg8[%c0_16, %c0_17], %22 {strides = array<i32>} : memref<8x1152xf32, #tpu.memory_space<vmem>>, vector<8x1152xf32>,
    return
  }
  func.func @transform_0(%arg0: i32) -> (i32, i32) {
    %c0_i32 = arith.constant 0 : i32
    %c0_i32_0 = arith.constant 0 : i32
    return %arg0, %c0_i32 : i32, i32
  }
  func.func @transform_1(%arg0: i32) -> (i32, i32) {
    %c0_i32 = arith.constant 0 : i32
    %c0_i32_0 = arith.constant 0 : i32
    %c0_i32_1 = arith.constant 0 : i32
    return %c0_i32, %c0_i32_0 : i32, i32
  }
  func.func @transform_2(%arg0: i32) -> (i32, i32) {
    %c0_i32 = arith.constant 0 : i32
    %c0_i32_0 = arith.constant 0 : i32
    %c0_i32_1 = arith.constant 0 : i32
    return %c0_i32, %c0_i32_0 : i32, i32
  }
  func.func @transform_3(%arg0: i32) -> (i32, i32) {
    %c0_i32 = arith.constant 0 : i32
    %c0_i32_0 = arith.constant 0 : i32
    %c0_i32_1 = arith.constant 0 : i32
    return %c0_i32, %c0_i32_0 : i32, i32
  }
  func.func @transform_4(%arg0: i32) -> (i32, i32) {
    %c0_i32 = arith.constant 0 : i32
    %c0_i32_0 = arith.constant 0 : i32
    %c0_i32_1 = arith.constant 0 : i32
    return %c0_i32, %c0_i32_0 : i32, i32
  }
  func.func @transform_5(%arg0: i32) -> (i32, i32) {
    %c0_i32 = arith.constant 0 : i32
    %c0_i32_0 = arith.constant 0 : i32
    %c0_i32_1 = arith.constant 0 : i32
    return %c0_i32, %c0_i32_0 : i32, i32
  }
  func.func @transform_6(%arg0: i32) -> (i32, i32) {
    %c0_i32 = arith.constant 0 : i32
    %c0_i32_0 = arith.constant 0 : i32
    %c0_i32_1 = arith.constant 0 : i32
    return %c0_i32, %c0_i32_0 : i32, i32
  }
  func.func @transform_7(%arg0: i32) -> (i32, i32) {
    %c0_i32 = arith.constant 0 : i32
    %c0_i32_0 = arith.constant 0 : i32
    return %arg0, %c0_i32 : i32, i32
  }
}

</mosaic_0001>

<llo_original>
// kernel: decoder_forward.1
$region0: #{decoder_forward.1}
  #allocation0 [shape = 'u32[]', space=smem, size = 0x4, offset = 0x4, fixed_abs, tag = 'smem constant byte address 0x4 - core index']
  #allocation1 [shape = 'u32[144,128]{1,0:T(1,128)}', space=vmem, size = 0x12000, scoped, tag = 'internal scratch']
  %s0 = inlined_call_operand.hbm [shape: f32[8,64], index: 0, kind: input, shape index: {}]
  %s1 = inlined_call_operand.hbm [shape: f32[64,128], index: 1, kind: input, shape index: {}]
  %s2 = inlined_call_operand.hbm [shape: f32[1,128], index: 2, kind: input, shape index: {}]
  %s3 = inlined_call_operand.hbm [shape: f32[128,256], index: 3, kind: input, shape index: {}]
  %s4 = inlined_call_operand.hbm [shape: f32[1,256], index: 4, kind: input, shape index: {}]
  %s5 = inlined_call_operand.hbm [shape: f32[256,1152], index: 5, kind: input, shape index: {}]
  %s6 = inlined_call_operand.hbm [shape: f32[1,1152], index: 6, kind: input, shape index: {}]
  %s7 = inlined_call_operand.hbm [shape: f32[8,1152], index: 7, kind: output, shape index: {}]
  %s8 = sld [smem:[#allocation0]]
  $region66: #{decoder_forward.1} parent=0
    _
  %s10 = ssub.s32 1, %s8
  %s11 = scalar_select 0, %s10, %s8
  $region1: #{decoder_forward.1} parent=0
    #allocation2 [shape = 'u8[4096]{0}', space=vmem, size = 0x1000, scoped, tag = 'input window, operand 0, single buffered']
    #allocation3 [shape = 's32[1]{0}', space=sflag, size = 0x4, scoped, tag = 'scoped memory for decoder_forward.1']
    #allocation4 [shape = 's32[1]{0}', space=sflag, size = 0x4, scoped, tag = 'scoped memory for decoder_forward.1']
    #allocation5 [shape = 'u8[32768]{0}', space=vmem, size = 0x8000, scoped, tag = 'input window, operand 1, single buffered']
    #allocation6 [shape = 's32[1]{0}', space=sflag, size = 0x4, scoped, tag = 'scoped memory for decoder_forward.1']
    #allocation7 [shape = 'u8[512]{0}', space=vmem, size = 0x400, scoped, tag = 'input window, operand 2, single buffered']
    #allocation8 [shape = 'u8[131072]{0}', space=vmem, size = 0x20000, scoped, tag = 'input window, operand 3, single buffered']
    #allocation9 [shape = 's32[1]{0}', space=sflag, size = 0x4, scoped, tag = 'scoped memory for decoder_forward.1']
    #allocation10 [shape = 'u8[1024]{0}', space=vmem, size = 0x400, scoped, tag = 'input window, operand 4, single buffered']
    #allocation11 [shape = 'u8[1179648]{0}', space=vmem, size = 0x120000, scoped, tag = 'input window, operand 5, single buffered']
    #allocation12 [shape = 's32[1]{0}', space=sflag, size = 0x4, scoped, tag = 'scoped memory for decoder_forward.1']
    #allocation13 [shape = 'u8[4608]{0}', space=vmem, size = 0x1400, scoped, tag = 'input window, operand 6, single buffered']
    #allocation14 [shape = 'u8[36864]{0}', space=vmem, size = 0x9000, scoped, tag = 'output window, operand 0, single buffered']
    %12 = vsyncpa [#allocation3], 0
    %13 = vsyncpa [#allocation6], 0
    %14 = vsyncpa [#allocation9], 0
    %15 = vsyncpa [#allocation12], 0
    %16 = vsyncpa [#allocation4], 0
    // Predicated region
    $region2: #{decoder_forward.1} parent=1 // pred_check
      _
    $region3: #{decoder_forward.1} parent=1 // pred_check_branch
      %18 = sbr.rel (0) target = $region5
    $region4: #{decoder_forward.1} parent=1 // pred_region
      %s20 = ssub.s32 128, 128
      %21 = vsyncadd [#allocation3], %s20
      %s23 = sshll.u32 [#allocation2], 4
      %s24 = int_to_ptr.vmem [resolvable:$true] %s23
      %26 = dma.hbm_to_vmem [thread:$0]  %s0, 128, %s24, [#allocation3]
    $region5: #{decoder_forward.1} parent=1 // pred_fallthru
      _
    // Predicated region
    $region6: #{decoder_forward.1} parent=1 // pred_check
      _
    $region7: #{decoder_forward.1} parent=1 // pred_check_branch
      %28 = sbr.rel (0) target = $region9
    $region8: #{decoder_forward.1} parent=1 // pred_region
      %s30 = ssub.s32 1024, 1024
      %31 = vsyncadd [#allocation6], %s30
      %s32 = sshll.u32 [#allocation5], 4
      %s33 = int_to_ptr.vmem [resolvable:$true] %s32
      %38 = dma.hbm_to_vmem [thread:$0]  %s1, 1024, %s33, [#allocation6], 128, 128, 8
    $region9: #{decoder_forward.1} parent=1 // pred_fallthru
      _
    // Predicated region
    $region10: #{decoder_forward.1} parent=1 // pred_check
      _
    $region11: #{decoder_forward.1} parent=1 // pred_check_branch
      %40 = sbr.rel (0) target = $region13
    $region12: #{decoder_forward.1} parent=1 // pred_region
      %s42 = ssub.s32 16, 16
      %43 = vsyncadd [#allocation6], %s42
      %s45 = sshll.u32 [#allocation7], 4
      %s46 = int_to_ptr.vmem [resolvable:$true] %s45
      %48 = dma.hbm_to_vmem [thread:$0]  %s2, 16, %s46, [#allocation6]
    $region13: #{decoder_forward.1} parent=1 // pred_fallthru
      _
    // Predicated region
    $region14: #{decoder_forward.1} parent=1 // pred_check
      _
    $region15: #{decoder_forward.1} parent=1 // pred_check_branch
      %50 = sbr.rel (0) target = $region17
    $region16: #{decoder_forward.1} parent=1 // pred_region
      %s52 = ssub.s32 4096, 4096
      %53 = vsyncadd [#allocation9], %s52
      %s54 = sshll.u32 [#allocation8], 4
      %s55 = int_to_ptr.vmem [resolvable:$true] %s54
      %60 = dma.hbm_to_vmem [thread:$0]  %s3, 4096, %s55, [#allocation9], 256, 256, 16
    $region17: #{decoder_forward.1} parent=1 // pred_fallthru
      _
    // Predicated region
    $region18: #{decoder_forward.1} parent=1 // pred_check
      _
    $region19: #{decoder_forward.1} parent=1 // pred_check_branch
      %62 = sbr.rel (0) target = $region21
    $region20: #{decoder_forward.1} parent=1 // pred_region
      %s64 = ssub.s32 32, 32
      %65 = vsyncadd [#allocation9], %s64
      %s67 = sshll.u32 [#allocation10], 4
      %s68 = int_to_ptr.vmem [resolvable:$true] %s67
      %70 = dma.hbm_to_vmem [thread:$0]  %s4, 32, %s68, [#allocation9]
    $region21: #{decoder_forward.1} parent=1 // pred_fallthru
      _
    // Predicated region
    $region22: #{decoder_forward.1} parent=1 // pred_check
      _
    $region23: #{decoder_forward.1} parent=1 // pred_check_branch
      %72 = sbr.rel (0) target = $region25
    $region24: #{decoder_forward.1} parent=1 // pred_region
      %s74 = ssub.s32 36864, 36864
      %75 = vsyncadd [#allocation12], %s74
      %s76 = sshll.u32 [#allocation11], 4
      %s77 = int_to_ptr.vmem [resolvable:$true] %s76
      %82 = dma.hbm_to_vmem [thread:$0]  %s5, 36864, %s77, [#allocation12], 1152, 1152, 72
    $region25: #{decoder_forward.1} parent=1 // pred_fallthru
      _
    // Predicated region
    $region26: #{decoder_forward.1} parent=1 // pred_check
      _
    $region27: #{decoder_forward.1} parent=1 // pred_check_branch
      %84 = sbr.rel (0) target = $region29
    $region28: #{decoder_forward.1} parent=1 // pred_region
      %s86 = ssub.s32 144, 144
      %87 = vsyncadd [#allocation12], %s86
      %s89 = sshll.u32 [#allocation13], 4
      %s90 = int_to_ptr.vmem [resolvable:$true] %s89
      %92 = dma.hbm_to_vmem [thread:$0]  %s6, 144, %s90, [#allocation12]
    $region29: #{decoder_forward.1} parent=1 // pred_fallthru
      _
    // Predicated region
    $region30: #{decoder_forward.1} parent=1 // pred_check
      _
    $region31: #{decoder_forward.1} parent=1 // pred_check_branch
      %94 = sbr.rel (0) target = $region33
    $region32: #{decoder_forward.1} parent=1 // pred_region
      %95 = dma.done [#allocation3], 128
    $region33: #{decoder_forward.1} parent=1 // pred_fallthru
      _
    // Predicated region
    $region34: #{decoder_forward.1} parent=1 // pred_check
      _
    $region35: #{decoder_forward.1} parent=1 // pred_check_branch
      %97 = sbr.rel (0) target = $region37
    $region36: #{decoder_forward.1} parent=1 // pred_region
      %98 = dma.done [#allocation6], 1024
    $region37: #{decoder_forward.1} parent=1 // pred_fallthru
      _
    // Predicated region
    $region38: #{decoder_forward.1} parent=1 // pred_check
      _
    $region39: #{decoder_forward.1} parent=1 // pred_check_branch
      %100 = sbr.rel (0) target = $region41
    $region40: #{decoder_forward.1} parent=1 // pred_region
      %101 = dma.done [#allocation6], 16
    $region41: #{decoder_forward.1} parent=1 // pred_fallthru
      _
    // Predicated region
    $region42: #{decoder_forward.1} parent=1 // pred_check
      _
    $region43: #{decoder_forward.1} parent=1 // pred_check_branch
      %103 = sbr.rel (0) target = $region45
    $region44: #{decoder_forward.1} parent=1 // pred_region
      %104 = dma.done [#allocation9], 4096
    $region45: #{decoder_forward.1} parent=1 // pred_fallthru
      _
    // Predicated region
    $region46: #{decoder_forward.1} parent=1 // pred_check
      _
    $region47: #{decoder_forward.1} parent=1 // pred_check_branch
      %106 = sbr.rel (0) target = $region49
    $region48: #{decoder_forward.1} parent=1 // pred_region
      %107 = dma.done [#allocation9], 32
    $region49: #{decoder_forward.1} parent=1 // pred_fallthru
      _
    // Predicated region
    $region50: #{decoder_forward.1} parent=1 // pred_check
      _
    $region51: #{decoder_forward.1} parent=1 // pred_check_branch
      %109 = sbr.rel (0) target = $region53
    $region52: #{decoder_forward.1} parent=1 // pred_region
      %110 = dma.done [#allocation12], 36864
    $region53: #{decoder_forward.1} parent=1 // pred_fallthru
      _
    // Predicated region
    $region54: #{decoder_forward.1} parent=1 // pred_check
      _
    $region55: #{decoder_forward.1} parent=1 // pred_check_branch
      %112 = sbr.rel (0) target = $region57
    $region56: #{decoder_forward.1} parent=1 // pred_region
      %113 = dma.done [#allocation12], 144
    $region57: #{decoder_forward.1} parent=1 // pred_fallthru
      _
    %v114 = vld [vmem:[#allocation2] sm:$0xff]
    %v115 = vld [vmem:[#allocation5] sm:$0xff]
    %v116 = vld [vmem:[#allocation5 + $0x8] sm:$0xff]
    %v117 = vld [vmem:[#allocation5 + $0x10] sm:$0xff]
    %v118 = vld [vmem:[#allocation5 + $0x18] sm:$0xff]
    %v119 = vld [vmem:[#allocation5 + $0x20] sm:$0xff]
    %v120 = vld [vmem:[#allocation5 + $0x28] sm:$0xff]
    %v121 = vld [vmem:[#allocation5 + $0x30] sm:$0xff]
    %v122 = vld [vmem:[#allocation5 + $0x38] sm:$0xff]
    %v123 = vld [vmem:[#allocation7] sm:$0x1]
    %v125 = vlaneseq
    %v126 = vshrl.u32 %v125, 7
    %v127 = vsub.s32 0, %v126
    %v128 = vrot.slane %v123, %v127
    %vm130 = vcmask 523264
    %v132 = vsel %vm130, %v114, 0
    %134 = vmatprep.subr.mxu0 0.0
    %135 = vmatpush1.msra.mxu0 %v115
    %136 = vmatprep.subr.mxu0 0.0
    %137 = vmatpush1.msra.mxu0 %v116
    %138 = vmatprep.subr.mxu0 0.0
    %139 = vmatpush1.msra.mxu0 %v117
    %140 = vmatprep.subr.mxu0 0.0
    %141 = vmatpush1.msra.mxu0 %v118
    %142 = vmatprep.subr.mxu0 0.0
    %143 = vmatpush1.msra.mxu0 %v119
    %144 = vmatprep.subr.mxu0 0.0
    %145 = vmatpush1.msra.mxu0 %v120
    %146 = vmatprep.subr.mxu0 0.0
    %147 = vmatpush1.msra.mxu0 %v121
    %148 = vmatprep.subr.mxu0 0.0
    %149 = vmatpush1.msra.mxu0 %v122
    %150 = vmatprep.subr.mxu0 0.0
    %151 = vmatpush1.msra.mxu0 0.0
    %152 = vmatprep.subr.mxu0 0.0
    %153 = vmatpush1.msra.mxu0 0.0
    %154 = vmatprep.subr.mxu0 0.0
    %155 = vmatpush1.msra.mxu0 0.0
    %156 = vmatprep.subr.mxu0 0.0
    %157 = vmatpush1.msra.mxu0 0.0
    %158 = vmatprep.subr.mxu0 0.0
    %159 = vmatpush1.msra.mxu0 0.0
    %160 = vmatprep.subr.mxu0 0.0
    %161 = vmatpush1.msra.mxu0 0.0
    %162 = vmatprep.subr.mxu0 0.0
    %163 = vmatpush1.msra.mxu0 0.0
    %164 = vmatprep.subr.mxu0 0.0
    %165 = vmatpush1.msra.mxu0 0.0
    %166 = vmatprep.subr.mxu0 0.0
    %167 = vmatpush1.msra.mxu0 0.0
    %168 = vmatprep.subr.mxu0 0.0
    %169 = vmatpush1.msra.mxu0 0.0
    %170 = vmatprep.subr.mxu0 0.0
    %171 = vmatpush1.msra.mxu0 0.0
    %172 = vmatprep.subr.mxu0 0.0
    %173 = vmatpush1.msra.mxu0 0.0
    %174 = vmatprep.subr.mxu0 0.0
    %175 = vmatpush1.msra.mxu0 0.0
    %176 = vmatprep.subr.mxu0 0.0
    %177 = vmatpush1.msra.mxu0 0.0
    %178 = vmatprep.subr.mxu0 0.0
    %179 = vmatpush1.msra.mxu0 0.0
    %180 = vmatprep.subr.mxu0 0.0
    %181 = vmatpush1.msra.mxu0 0.0
    %182 = vmatprep.subr.mxu0 0.0
    %183 = vmatpush1.msra.mxu0 0.0
    %184 = vmatprep.subr.mxu0 0.0
    %185 = vmatpush1.msra.mxu0 0.0
    %186 = vmatprep.subr.mxu0 0.0
    %187 = vmatpush1.msra.mxu0 0.0
    %188 = vmatprep.subr.mxu0 0.0
    %189 = vmatpush1.msra.mxu0 0.0
    %190 = vmatprep.subr.mxu0 0.0
    %191 = vmatpush1.msra.mxu0 0.0
    %192 = vmatprep.subr.mxu0 0.0
    %193 = vmatpush1.msra.mxu0 0.0
    %194 = vmatprep.subr.mxu0 0.0
    %195 = vmatpush1.msra.mxu0 0.0
    %196 = vmatprep.subr.mxu0 0.0
    %197 = vmatpush1.msra.mxu0 0.0
    %198 = vmatprep.mubr.f32.mxu0 0.0
    %199 = vmatmul.mubr.f32.gmra.mrb[0].mxu0 %v132
    %v200 = vpop.f32.mrb[0].mxu0
    %v201 = vadd.f32 %v128, %v200
    %v202 = vpop.f32.mrb[0].mxu0
    %203 = vdwg.mxu0
    %v204 = vtanh.pop %v201
    %v205 = vld [vmem:[#allocation8] sm:$0xff]
    %v206 = vld [vmem:[#allocation8 + $0x8] sm:$0xff]
    %v207 = vld [vmem:[#allocation8 + $0x10] sm:$0xff]
    %v208 = vld [vmem:[#allocation8 + $0x18] sm:$0xff]
    %v209 = vld [vmem:[#allocation8 + $0x20] sm:$0xff]
    %v210 = vld [vmem:[#allocation8 + $0x28] sm:$0xff]
    %v211 = vld [vmem:[#allocation8 + $0x30] sm:$0xff]
    %v212 = vld [vmem:[#allocation8 + $0x38] sm:$0xff]
    %v213 = vld [vmem:[#allocation8 + $0x40] sm:$0xff]
    %v214 = vld [vmem:[#allocation8 + $0x48] sm:$0xff]
    %v215 = vld [vmem:[#allocation8 + $0x50] sm:$0xff]
    %v216 = vld [vmem:[#allocation8 + $0x58] sm:$0xff]
    %v217 = vld [vmem:[#allocation8 + $0x60] sm:$0xff]
    %v218 = vld [vmem:[#allocation8 + $0x68] sm:$0xff]
    %v219 = vld [vmem:[#allocation8 + $0x70] sm:$0xff]
    %v220 = vld [vmem:[#allocation8 + $0x78] sm:$0xff]
    %v221 = vld [vmem:[#allocation8 + $0x80] sm:$0xff]
    %v222 = vld [vmem:[#allocation8 + $0x88] sm:$0xff]
    %v223 = vld [vmem:[#allocation8 + $0x90] sm:$0xff]
    %v224 = vld [vmem:[#allocation8 + $0x98] sm:$0xff]
    %v225 = vld [vmem:[#allocation8 + $0xa0] sm:$0xff]
    %v226 = vld [vmem:[#allocation8 + $0xa8] sm:$0xff]
    %v227 = vld [vmem:[#allocation8 + $0xb0] sm:$0xff]
    %v228 = vld [vmem:[#allocation8 + $0xb8] sm:$0xff]
    %v229 = vld [vmem:[#allocation8 + $0xc0] sm:$0xff]
    %v230 = vld [vmem:[#allocation8 + $0xc8] sm:$0xff]
    %v231 = vld [vmem:[#allocation8 + $0xd0] sm:$0xff]
    %v232 = vld [vmem:[#allocation8 + $0xd8] sm:$0xff]
    %v233 = vld [vmem:[#allocation8 + $0xe0] sm:$0xff]
    %v234 = vld [vmem:[#allocation8 + $0xe8] sm:$0xff]
    %v235 = vld [vmem:[#allocation8 + $0xf0] sm:$0xff]
    %v236 = vld [vmem:[#allocation8 + $0xf8] sm:$0xff]
    %v237 = vld [vmem:[#allocation10] sm:$0x3]
    %v239 = vlaneseq
    %v240 = vshrl.u32 %v239, 7
    %v241 = vsub.s32 0, %v240
    %v242 = vrot.slane %v237, %v241
    %v243 = vlaneseq
    %v244 = vshrl.u32 %v243, 7
    %v245 = vsub.s32 1, %v244
    %v246 = vrot.slane %v237, %v245
    %249 = vmatprep.subr.mxu0 %v206
    %250 = vmatpush1.msra.mxu0 %v205
    %251 = vmatprep.subr.mxu0 %v208
    %252 = vmatpush1.msra.mxu0 %v207
    %253 = vmatprep.subr.mxu0 %v210
    %254 = vmatpush1.msra.mxu0 %v209
    %255 = vmatprep.subr.mxu0 %v212
    %256 = vmatpush1.msra.mxu0 %v211
    %257 = vmatprep.subr.mxu0 %v214
    %258 = vmatpush1.msra.mxu0 %v213
    %259 = vmatprep.subr.mxu0 %v216
    %260 = vmatpush1.msra.mxu0 %v215
    %261 = vmatprep.subr.mxu0 %v218
    %262 = vmatpush1.msra.mxu0 %v217
    %263 = vmatprep.subr.mxu0 %v220
    %264 = vmatpush1.msra.mxu0 %v219
    %265 = vmatprep.subr.mxu0 %v222
    %266 = vmatpush1.msra.mxu0 %v221
    %267 = vmatprep.subr.mxu0 %v224
    %268 = vmatpush1.msra.mxu0 %v223
    %269 = vmatprep.subr.mxu0 %v226
    %270 = vmatpush1.msra.mxu0 %v225
    %271 = vmatprep.subr.mxu0 %v228
    %272 = vmatpush1.msra.mxu0 %v227
    %273 = vmatprep.subr.mxu0 %v230
    %274 = vmatpush1.msra.mxu0 %v229
    %275 = vmatprep.subr.mxu0 %v232
    %276 = vmatpush1.msra.mxu0 %v231
    %277 = vmatprep.subr.mxu0 %v234
    %278 = vmatpush1.msra.mxu0 %v233
    %279 = vmatprep.subr.mxu0 %v236
    %280 = vmatpush1.msra.mxu0 %v235
    %281 = vmatprep.subr.mxu0 0.0
    %282 = vmatpush1.msra.mxu0 0.0
    %283 = vmatprep.subr.mxu0 0.0
    %284 = vmatpush1.msra.mxu0 0.0
    %285 = vmatprep.subr.mxu0 0.0
    %286 = vmatpush1.msra.mxu0 0.0
    %287 = vmatprep.subr.mxu0 0.0
    %288 = vmatpush1.msra.mxu0 0.0
    %289 = vmatprep.subr.mxu0 0.0
    %290 = vmatpush1.msra.mxu0 0.0
    %291 = vmatprep.subr.mxu0 0.0
    %292 = vmatpush1.msra.mxu0 0.0
    %293 = vmatprep.subr.mxu0 0.0
    %294 = vmatpush1.msra.mxu0 0.0
    %295 = vmatprep.subr.mxu0 0.0
    %296 = vmatpush1.msra.mxu0 0.0
    %297 = vmatprep.subr.mxu0 0.0
    %298 = vmatpush1.msra.mxu0 0.0
    %299 = vmatprep.subr.mxu0 0.0
    %300 = vmatpush1.msra.mxu0 0.0
    %301 = vmatprep.subr.mxu0 0.0
    %302 = vmatpush1.msra.mxu0 0.0
    %303 = vmatprep.subr.mxu0 0.0
    %304 = vmatpush1.msra.mxu0 0.0
    %305 = vmatprep.subr.mxu0 0.0
    %306 = vmatpush1.msra.mxu0 0.0
    %307 = vmatprep.subr.mxu0 0.0
    %308 = vmatpush1.msra.mxu0 0.0
    %309 = vmatprep.subr.mxu0 0.0
    %310 = vmatpush1.msra.mxu0 0.0
    %311 = vmatprep.subr.mxu0 0.0
    %312 = vmatpush1.msra.mxu0 0.0
    %313 = vmatprep.mubr.f32.mxu0 0.0
    %314 = vmatmul.mubr.f32.gmra.mrb[0].mxu0 %v204
    %v315 = vpop.f32.mrb[0].mxu0
    %v316 = vadd.f32 %v242, %v315
    %v317 = vpop.f32.mrb[0].mxu0
    %v318 = vadd.f32 %v246, %v317
    %319 = vdwg.mxu0
    %v320 = vtanh.pop %v316
    %v321 = vtanh.pop %v318
    %v322 = vld [vmem:[#allocation11] sm:$0xff]
    %v323 = vld [vmem:[#allocation11 + $0x8] sm:$0xff]
    %v324 = vld [vmem:[#allocation11 + $0x10] sm:$0xff]
    %v325 = vld [vmem:[#allocation11 + $0x18] sm:$0xff]
    %v326 = vld [vmem:[#allocation11 + $0x20] sm:$0xff]
    %v327 = vld [vmem:[#allocation11 + $0x28] sm:$0xff]
    %v328 = vld [vmem:[#allocation11 + $0x30] sm:$0xff]
    %v329 = vld [vmem:[#allocation11 + $0x38] sm:$0xff]
    %v330 = vld [vmem:[#allocation11 + $0x40] sm:$0xff]
    %v331 = vld [vmem:[#allocation11 + $0x48] sm:$0xff]
    %v332 = vld [vmem:[#allocation11 + $0x50] sm:$0xff]
    %v333 = vld [vmem:[#allocation11 + $0x58] sm:$0xff]
    %v334 = vld [vmem:[#allocation11 + $0x60] sm:$0xff]
    %v335 = vld [vmem:[#allocation11 + $0x68] sm:$0xff]
    %v336 = vld [vmem:[#allocation11 + $0x70] sm:$0xff]
    %v337 = vld [vmem:[#allocation11 + $0x78] sm:$0xff]
    %v338 = vld [vmem:[#allocation11 + $0x80] sm:$0xff]
    %v339 = vld [vmem:[#allocation11 + $0x88] sm:$0xff]
    %v340 = vld [vmem:[#allocation11 + $0x90] sm:$0xff]
    %v341 = vld [vmem:[#allocation11 + $0x98] sm:$0xff]
    %v342 = vld [vmem:[#allocation11 + $0xa0] sm:$0xff]
    %v343 = vld [vmem:[#allocation11 + $0xa8] sm:$0xff]
    %v344 = vld [vmem:[#allocation11 + $0xb0] sm:$0xff]
    %v345 = vld [vmem:[#allocation11 + $0xb8] sm:$0xff]
    %v346 = vld [vmem:[#allocation11 + $0xc0] sm:$0xff]
    %v347 = vld [vmem:[#allocation11 + $0xc8] sm:$0xff]
    %v348 = vld [vmem:[#allocation11 + $0xd0] sm:$0xff]
    %v349 = vld [vmem:[#allocation11 + $0xd8] sm:$0xff]
    %v350 = vld [vmem:[#allocation11 + $0xe0] sm:$0xff]
    %v351 = vld [vmem:[#allocation11 + $0xe8] sm:$0xff]
    %v352 = vld [vmem:[#allocation11 + $0xf0] sm:$0xff]
    %v353 = vld [vmem:[#allocation11 + $0xf8] sm:$0xff]
    %v354 = vld [vmem:[#allocation11 + $0x100] sm:$0xff]
    %v355 = vld [vmem:[#allocation11 + $0x108] sm:$0xff]
    %v356 = vld [vmem:[#allocation11 + $0x110] sm:$0xff]
    %v357 = vld [vmem:[#allocation11 + $0x118] sm:$0xff]
    %v358 = vld [vmem:[#allocation11 + $0x120] sm:$0xff]
    %v359 = vld [vmem:[#allocation11 + $0x128] sm:$0xff]
    %v360 = vld [vmem:[#allocation11 + $0x130] sm:$0xff]
    %v361 = vld [vmem:[#allocation11 + $0x138] sm:$0xff]
    %v362 = vld [vmem:[#allocation11 + $0x140] sm:$0xff]
    %v363 = vld [vmem:[#allocation11 + $0x148] sm:$0xff]
    %v364 = vld [vmem:[#allocation11 + $0x150] sm:$0xff]
    %v365 = vld [vmem:[#allocation11 + $0x158] sm:$0xff]
    %v366 = vld [vmem:[#allocation11 + $0x160] sm:$0xff]
    %v367 = vld [vmem:[#allocation11 + $0x168] sm:$0xff]
    %v368 = vld [vmem:[#allocation11 + $0x170] sm:$0xff]
    %v369 = vld [vmem:[#allocation11 + $0x178] sm:$0xff]
    %v370 = vld [vmem:[#allocation11 + $0x180] sm:$0xff]
    %v371 = vld [vmem:[#allocation11 + $0x188] sm:$0xff]
    %v372 = vld [vmem:[#allocation11 + $0x190] sm:$0xff]
    %v373 = vld [vmem:[#allocation11 + $0x198] sm:$0xff]
    %v374 = vld [vmem:[#allocation11 + $0x1a0] sm:$0xff]
    %v375 = vld [vmem:[#allocation11 + $0x1a8] sm:$0xff]
    %v376 = vld [vmem:[#allocation11 + $0x1b0] sm:$0xff]
    %v377 = vld [vmem:[#allocation11 + $0x1b8] sm:$0xff]
    %v378 = vld [vmem:[#allocation11 + $0x1c0] sm:$0xff]
    %v379 = vld [vmem:[#allocation11 + $0x1c8] sm:$0xff]
    %v380 = vld [vmem:[#allocation11 + $0x1d0] sm:$0xff]
    %v381 = vld [vmem:[#allocation11 + $0x1d8] sm:$0xff]
    %v382 = vld [vmem:[#allocation11 + $0x1e0] sm:$0xff]
    %v383 = vld [vmem:[#allocation11 + $0x1e8] sm:$0xff]
    %v384 = vld [vmem:[#allocation11 + $0x1f0] sm:$0xff]
    %v385 = vld [vmem:[#allocation11 + $0x1f8] sm:$0xff]
    %v386 = vld [vmem:[#allocation11 + $0x200] sm:$0xff]
    %v387 = vld [vmem:[#allocation11 + $0x208] sm:$0xff]
    %v388 = vld [vmem:[#allocation11 + $0x210] sm:$0xff]
    %v389 = vld [vmem:[#allocation11 + $0x218] sm:$0xff]
    %v390 = vld [vmem:[#allocation11 + $0x220] sm:$0xff]
    %v391 = vld [vmem:[#allocation11 + $0x228] sm:$0xff]
    %v392 = vld [vmem:[#allocation11 + $0x230] sm:$0xff]
    %v393 = vld [vmem:[#allocation11 + $0x238] sm:$0xff]
    %v394 = vld [vmem:[#allocation11 + $0x240] sm:$0xff]
    %v395 = vld [vmem:[#allocation11 + $0x248] sm:$0xff]
    %v396 = vld [vmem:[#allocation11 + $0x250] sm:$0xff]
    %v397 = vld [vmem:[#allocation11 + $0x258] sm:$0xff]
    %v398 = vld [vmem:[#allocation11 + $0x260] sm:$0xff]
    %v399 = vld [vmem:[#allocation11 + $0x268] sm:$0xff]
    %v400 = vld [vmem:[#allocation11 + $0x270] sm:$0xff]
    %v401 = vld [vmem:[#allocation11 + $0x278] sm:$0xff]
    %v402 = vld [vmem:[#allocation11 + $0x280] sm:$0xff]
    %v403 = vld [vmem:[#allocation11 + $0x288] sm:$0xff]
    %v404 = vld [vmem:[#allocation11 + $0x290] sm:$0xff]
    %v405 = vld [vmem:[#allocation11 + $0x298] sm:$0xff]
    %v406 = vld [vmem:[#allocation11 + $0x2a0] sm:$0xff]
    %v407 = vld [vmem:[#allocation11 + $0x2a8] sm:$0xff]
    %v408 = vld [vmem:[#allocation11 + $0x2b0] sm:$0xff]
    %v409 = vld [vmem:[#allocation11 + $0x2b8] sm:$0xff]
    %v410 = vld [vmem:[#allocation11 + $0x2c0] sm:$0xff]
    %v411 = vld [vmem:[#allocation11 + $0x2c8] sm:$0xff]
    %v412 = vld [vmem:[#allocation11 + $0x2d0] sm:$0xff]
    %v413 = vld [vmem:[#allocation11 + $0x2d8] sm:$0xff]
    %v414 = vld [vmem:[#allocation11 + $0x2e0] sm:$0xff]
    %v415 = vld [vmem:[#allocation11 + $0x2e8] sm:$0xff]
    %v416 = vld [vmem:[#allocation11 + $0x2f0] sm:$0xff]
    %v417 = vld [vmem:[#allocation11 + $0x2f8] sm:$0xff]
    %v418 = vld [vmem:[#allocation11 + $0x300] sm:$0xff]
    %v419 = vld [vmem:[#allocation11 + $0x308] sm:$0xff]
    %v420 = vld [vmem:[#allocation11 + $0x310] sm:$0xff]
    %v421 = vld [vmem:[#allocation11 + $0x318] sm:$0xff]
    %v422 = vld [vmem:[#allocation11 + $0x320] sm:$0xff]
    %v423 = vld [vmem:[#allocation11 + $0x328] sm:$0xff]
    %v424 = vld [vmem:[#allocation11 + $0x330] sm:$0xff]
    %v425 = vld [vmem:[#allocation11 + $0x338] sm:$0xff]
    %v426 = vld [vmem:[#allocation11 + $0x340] sm:$0xff]
    %v427 = vld [vmem:[#allocation11 + $0x348] sm:$0xff]
    %v428 = vld [vmem:[#allocation11 + $0x350] sm:$0xff]
    %v429 = vld [vmem:[#allocation11 + $0x358] sm:$0xff]
    %v430 = vld [vmem:[#allocation11 + $0x360] sm:$0xff]
    %v431 = vld [vmem:[#allocation11 + $0x368] sm:$0xff]
    %v432 = vld [vmem:[#allocation11 + $0x370] sm:$0xff]
    %v433 = vld [vmem:[#allocation11 + $0x378] sm:$0xff]
    %v434 = vld [vmem:[#allocation11 + $0x380] sm:$0xff]
    %v435 = vld [vmem:[#allocation11 + $0x388] sm:$0xff]
    %v436 = vld [vmem:[#allocation11 + $0x390] sm:$0xff]
    %v437 = vld [vmem:[#allocation11 + $0x398] sm:$0xff]
    %v438 = vld [vmem:[#allocation11 + $0x3a0] sm:$0xff]
    %v439 = vld [vmem:[#allocation11 + $0x3a8] sm:$0xff]
    %v440 = vld [vmem:[#allocation11 + $0x3b0] sm:$0xff]
    %v441 = vld [vmem:[#allocation11 + $0x3b8] sm:$0xff]
    %v442 = vld [vmem:[#allocation11 + $0x3c0] sm:$0xff]
    %v443 = vld [vmem:[#allocation11 + $0x3c8] sm:$0xff]
    %v444 = vld [vmem:[#allocation11 + $0x3d0] sm:$0xff]
    %v445 = vld [vmem:[#allocation11 + $0x3d8] sm:$0xff]
    %v446 = vld [vmem:[#allocation11 + $0x3e0] sm:$0xff]
    %v447 = vld [vmem:[#allocation11 + $0x3e8] sm:$0xff]
    %v448 = vld [vmem:[#allocation11 + $0x3f0] sm:$0xff]
    %v449 = vld [vmem:[#allocation11 + $0x3f8] sm:$0xff]
    %v450 = vld [vmem:[#allocation11 + $0x400] sm:$0xff]
    %v451 = vld [vmem:[#allocation11 + $0x408] sm:$0xff]
    %v452 = vld [vmem:[#allocation11 + $0x410] sm:$0xff]
    %v453 = vld [vmem:[#allocation11 + $0x418] sm:$0xff]
    %v454 = vld [vmem:[#allocation11 + $0x420] sm:$0xff]
    %v455 = vld [vmem:[#allocation11 + $0x428] sm:$0xff]
    %v456 = vld [vmem:[#allocation11 + $0x430] sm:$0xff]
    %v457 = vld [vmem:[#allocation11 + $0x438] sm:$0xff]
    %v458 = vld [vmem:[#allocation11 + $0x440] sm:$0xff]
    %v459 = vld [vmem:[#allocation11 + $0x448] sm:$0xff]
    %v460 = vld [vmem:[#allocation11 + $0x450] sm:$0xff]
    %v461 = vld [vmem:[#allocation11 + $0x458] sm:$0xff]
    %v462 = vld [vmem:[#allocation11 + $0x460] sm:$0xff]
    %v463 = vld [vmem:[#allocation11 + $0x468] sm:$0xff]
    %v464 = vld [vmem:[#allocation11 + $0x470] sm:$0xff]
    %v465 = vld [vmem:[#allocation11 + $0x478] sm:$0xff]
    %v466 = vld [vmem:[#allocation11 + $0x480] sm:$0xff]
    %v467 = vld [vmem:[#allocation11 + $0x488] sm:$0xff]
    %v468 = vld [vmem:[#allocation11 + $0x490] sm:$0xff]
    %v469 = vld [vmem:[#allocation11 + $0x498] sm:$0xff]
    %v470 = vld [vmem:[#allocation11 + $0x4a0] sm:$0xff]
    %v471 = vld [vmem:[#allocation11 + $0x4a8] sm:$0xff]
    %v472 = vld [vmem:[#allocation11 + $0x4b0] sm:$0xff]
    %v473 = vld [vmem:[#allocation11 + $0x4b8] sm:$0xff]
    %v474 = vld [vmem:[#allocation11 + $0x4c0] sm:$0xff]
    %v475 = vld [vmem:[#allocation11 + $0x4c8] sm:$0xff]
    %v476 = vld [vmem:[#allocation11 + $0x4d0] sm:$0xff]
    %v477 = vld [vmem:[#allocation11 + $0x4d8] sm:$0xff]
    %v478 = vld [vmem:[#allocation11 + $0x4e0] sm:$0xff]
    %v479 = vld [vmem:[#allocation11 + $0x4e8] sm:$0xff]
    %v480 = vld [vmem:[#allocation11 + $0x4f0] sm:$0xff]
    %v481 = vld [vmem:[#allocation11 + $0x4f8] sm:$0xff]
    %v482 = vld [vmem:[#allocation11 + $0x500] sm:$0xff]
    %v483 = vld [vmem:[#allocation11 + $0x508] sm:$0xff]
    %v484 = vld [vmem:[#allocation11 + $0x510] sm:$0xff]
    %v485 = vld [vmem:[#allocation11 + $0x518] sm:$0xff]
    %v486 = vld [vmem:[#allocation11 + $0x520] sm:$0xff]
    %v487 = vld [vmem:[#allocation11 + $0x528] sm:$0xff]
    %v488 = vld [vmem:[#allocation11 + $0x530] sm:$0xff]
    %v489 = vld [vmem:[#allocation11 + $0x538] sm:$0xff]
    %v490 = vld [vmem:[#allocation11 + $0x540] sm:$0xff]
    %v491 = vld [vmem:[#allocation11 + $0x548] sm:$0xff]
    %v492 = vld [vmem:[#allocation11 + $0x550] sm:$0xff]
    %v493 = vld [vmem:[#allocation11 + $0x558] sm:$0xff]
    %v494 = vld [vmem:[#allocation11 + $0x560] sm:$0xff]
    %v495 = vld [vmem:[#allocation11 + $0x568] sm:$0xff]
    %v496 = vld [vmem:[#allocation11 + $0x570] sm:$0xff]
    %v497 = vld [vmem:[#allocation11 + $0x578] sm:$0xff]
    %v498 = vld [vmem:[#allocation11 + $0x580] sm:$0xff]
    %v499 = vld [vmem:[#allocation11 + $0x588] sm:$0xff]
    %v500 = vld [vmem:[#allocation11 + $0x590] sm:$0xff]
    %v501 = vld [vmem:[#allocation11 + $0x598] sm:$0xff]
    %v502 = vld [vmem:[#allocation11 + $0x5a0] sm:$0xff]
    %v503 = vld [vmem:[#allocation11 + $0x5a8] sm:$0xff]
    %v504 = vld [vmem:[#allocation11 + $0x5b0] sm:$0xff]
    %v505 = vld [vmem:[#allocation11 + $0x5b8] sm:$0xff]
    %v506 = vld [vmem:[#allocation11 + $0x5c0] sm:$0xff]
    %v507 = vld [vmem:[#allocation11 + $0x5c8] sm:$0xff]
    %v508 = vld [vmem:[#allocation11 + $0x5d0] sm:$0xff]
    %v509 = vld [vmem:[#allocation11 + $0x5d8] sm:$0xff]
    %v510 = vld [vmem:[#allocation11 + $0x5e0] sm:$0xff]
    %v511 = vld [vmem:[#allocation11 + $0x5e8] sm:$0xff]
    %v512 = vld [vmem:[#allocation11 + $0x5f0] sm:$0xff]
    %v513 = vld [vmem:[#allocation11 + $0x5f8] sm:$0xff]
    %v514 = vld [vmem:[#allocation11 + $0x600] sm:$0xff]
    %v515 = vld [vmem:[#allocation11 + $0x608] sm:$0xff]
    %v516 = vld [vmem:[#allocation11 + $0x610] sm:$0xff]
    %v517 = vld [vmem:[#allocation11 + $0x618] sm:$0xff]
    %v518 = vld [vmem:[#allocation11 + $0x620] sm:$0xff]
    %v519 = vld [vmem:[#allocation11 + $0x628] sm:$0xff]
    %v520 = vld [vmem:[#allocation11 + $0x630] sm:$0xff]
    %v521 = vld [vmem:[#allocation11 + $0x638] sm:$0xff]
    %v522 = vld [vmem:[#allocation11 + $0x640] sm:$0xff]
    %v523 = vld [vmem:[#allocation11 + $0x648] sm:$0xff]
    %v524 = vld [vmem:[#allocation11 + $0x650] sm:$0xff]
    %v525 = vld [vmem:[#allocation11 + $0x658] sm:$0xff]
    %v526 = vld [vmem:[#allocation11 + $0x660] sm:$0xff]
    %v527 = vld [vmem:[#allocation11 + $0x668] sm:$0xff]
    %v528 = vld [vmem:[#allocation11 + $0x670] sm:$0xff]
    %v529 = vld [vmem:[#allocation11 + $0x678] sm:$0xff]
    %v530 = vld [vmem:[#allocation11 + $0x680] sm:$0xff]
    %v531 = vld [vmem:[#allocation11 + $0x688] sm:$0xff]
    %v532 = vld [vmem:[#allocation11 + $0x690] sm:$0xff]
    %v533 = vld [vmem:[#allocation11 + $0x698] sm:$0xff]
    %v534 = vld [vmem:[#allocation11 + $0x6a0] sm:$0xff]
    %v535 = vld [vmem:[#allocation11 + $0x6a8] sm:$0xff]
    %v536 = vld [vmem:[#allocation11 + $0x6b0] sm:$0xff]
    %v537 = vld [vmem:[#allocation11 + $0x6b8] sm:$0xff]
    %v538 = vld [vmem:[#allocation11 + $0x6c0] sm:$0xff]
    %v539 = vld [vmem:[#allocation11 + $0x6c8] sm:$0xff]
    %v540 = vld [vmem:[#allocation11 + $0x6d0] sm:$0xff]
    %v541 = vld [vmem:[#allocation11 + $0x6d8] sm:$0xff]
    %v542 = vld [vmem:[#allocation11 + $0x6e0] sm:$0xff]
    %v543 = vld [vmem:[#allocation11 + $0x6e8] sm:$0xff]
    %v544 = vld [vmem:[#allocation11 + $0x6f0] sm:$0xff]
    %v545 = vld [vmem:[#allocation11 + $0x6f8] sm:$0xff]
    %v546 = vld [vmem:[#allocation11 + $0x700] sm:$0xff]
    %v547 = vld [vmem:[#allocation11 + $0x708] sm:$0xff]
    %v548 = vld [vmem:[#allocation11 + $0x710] sm:$0xff]
    %v549 = vld [vmem:[#allocation11 + $0x718] sm:$0xff]
    %v550 = vld [vmem:[#allocation11 + $0x720] sm:$0xff]
    %v551 = vld [vmem:[#allocation11 + $0x728] sm:$0xff]
    %v552 = vld [vmem:[#allocation11 + $0x730] sm:$0xff]
    %v553 = vld [vmem:[#allocation11 + $0x738] sm:$0xff]
    %v554 = vld [vmem:[#allocation11 + $0x740] sm:$0xff]
    %v555 = vld [vmem:[#allocation11 + $0x748] sm:$0xff]
    %v556 = vld [vmem:[#allocation11 + $0x750] sm:$0xff]
    %v557 = vld [vmem:[#allocation11 + $0x758] sm:$0xff]
    %v558 = vld [vmem:[#allocation11 + $0x760] sm:$0xff]
    %v559 = vld [vmem:[#allocation11 + $0x768] sm:$0xff]
    %v560 = vld [vmem:[#allocation11 + $0x770] sm:$0xff]
    %v561 = vld [vmem:[#allocation11 + $0x778] sm:$0xff]
    %v562 = vld [vmem:[#allocation11 + $0x780] sm:$0xff]
    %v563 = vld [vmem:[#allocation11 + $0x788] sm:$0xff]
    %v564 = vld [vmem:[#allocation11 + $0x790] sm:$0xff]
    %v565 = vld [vmem:[#allocation11 + $0x798] sm:$0xff]
    %v566 = vld [vmem:[#allocation11 + $0x7a0] sm:$0xff]
    %v567 = vld [vmem:[#allocation11 + $0x7a8] sm:$0xff]
    %v568 = vld [vmem:[#allocation11 + $0x7b0] sm:$0xff]
    %v569 = vld [vmem:[#allocation11 + $0x7b8] sm:$0xff]
    %v570 = vld [vmem:[#allocation11 + $0x7c0] sm:$0xff]
    %v571 = vld [vmem:[#allocation11 + $0x7c8] sm:$0xff]
    %v572 = vld [vmem:[#allocation11 + $0x7d0] sm:$0xff]
    %v573 = vld [vmem:[#allocation11 + $0x7d8] sm:$0xff]
    %v574 = vld [vmem:[#allocation11 + $0x7e0] sm:$0xff]
    %v575 = vld [vmem:[#allocation11 + $0x7e8] sm:$0xff]
    %v576 = vld [vmem:[#allocation11 + $0x7f0] sm:$0xff]
    %v577 = vld [vmem:[#allocation11 + $0x7f8] sm:$0xff]
    %v578 = vld [vmem:[#allocation11 + $0x800] sm:$0xff]
    %v579 = vld [vmem:[#allocation11 + $0x808] sm:$0xff]
    %v580 = vld [vmem:[#allocation11 + $0x810] sm:$0xff]
    %v581 = vld [vmem:[#allocation11 + $0x818] sm:$0xff]
    %v582 = vld [vmem:[#allocation11 + $0x820] sm:$0xff]
    %v583 = vld [vmem:[#allocation11 + $0x828] sm:$0xff]
    %v584 = vld [vmem:[#allocation11 + $0x830] sm:$0xff]
    %v585 = vld [vmem:[#allocation11 + $0x838] sm:$0xff]
    %v586 = vld [vmem:[#allocation11 + $0x840] sm:$0xff]
    %v587 = vld [vmem:[#allocation11 + $0x848] sm:$0xff]
    %v588 = vld [vmem:[#allocation11 + $0x850] sm:$0xff]
    %v589 = vld [vmem:[#allocation11 + $0x858] sm:$0xff]
    %v590 = vld [vmem:[#allocation11 + $0x860] sm:$0xff]
    %v591 = vld [vmem:[#allocation11 + $0x868] sm:$0xff]
    %v592 = vld [vmem:[#allocation11 + $0x870] sm:$0xff]
    %v593 = vld [vmem:[#allocation11 + $0x878] sm:$0xff]
    %v594 = vld [vmem:[#allocation11 + $0x880] sm:$0xff]
    %v595 = vld [vmem:[#allocation11 + $0x888] sm:$0xff]
    %v596 = vld [vmem:[#allocation11 + $0x890] sm:$0xff]
    %v597 = vld [vmem:[#allocation11 + $0x898] sm:$0xff]
    %v598 = vld [vmem:[#allocation11 + $0x8a0] sm:$0xff]
    %v599 = vld [vmem:[#allocation11 + $0x8a8] sm:$0xff]
    %v600 = vld [vmem:[#allocation11 + $0x8b0] sm:$0xff]
    %v601 = vld [vmem:[#allocation11 + $0x8b8] sm:$0xff]
    %v602 = vld [vmem:[#allocation11 + $0x8c0] sm:$0xff]
    %v603 = vld [vmem:[#allocation11 + $0x8c8] sm:$0xff]
    %v604 = vld [vmem:[#allocation11 + $0x8d0] sm:$0xff]
    %v605 = vld [vmem:[#allocation11 + $0x8d8] sm:$0xff]
    %v606 = vld [vmem:[#allocation11 + $0x8e0] sm:$0xff]
    %v607 = vld [vmem:[#allocation11 + $0x8e8] sm:$0xff]
    %v608 = vld [vmem:[#allocation11 + $0x8f0] sm:$0xff]
    %v609 = vld [vmem:[#allocation11 + $0x8f8] sm:$0xff]
    %v610 = vld [vmem:[#allocation13] sm:$0xff]
    %v611 = vld [vmem:[#allocation13 + $0x8] sm:$0x1]
    %v614 = vlaneseq
    %v615 = vshrl.u32 %v614, 7
    %v616 = vsub.s32 0, %v615
    %v617 = vrot.slane %v610, %v616
    %v618 = vlaneseq
    %v619 = vshrl.u32 %v618, 7
    %v620 = vsub.s32 1, %v619
    %v621 = vrot.slane %v610, %v620
    %v622 = vlaneseq
    %v623 = vshrl.u32 %v622, 7
    %v624 = vsub.s32 2, %v623
    %v625 = vrot.slane %v610, %v624
    %v626 = vlaneseq
    %v627 = vshrl.u32 %v626, 7
    %v628 = vsub.s32 3, %v627
    %v629 = vrot.slane %v610, %v628
    %v630 = vlaneseq
    %v631 = vshrl.u32 %v630, 7
    %v632 = vsub.s32 4, %v631
    %v633 = vrot.slane %v610, %v632
    %v634 = vlaneseq
    %v635 = vshrl.u32 %v634, 7
    %v636 = vsub.s32 5, %v635
    %v637 = vrot.slane %v610, %v636
    %v638 = vlaneseq
    %v639 = vshrl.u32 %v638, 7
    %v640 = vsub.s32 6, %v639
    %v641 = vrot.slane %v610, %v640
    %v642 = vlaneseq
    %v643 = vshrl.u32 %v642, 7
    %v644 = vsub.s32 7, %v643
    %v645 = vrot.slane %v610, %v644
    %v646 = vlaneseq
    %v647 = vshrl.u32 %v646, 7
    %v648 = vsub.s32 0, %v647
    %v649 = vrot.slane %v611, %v648
    %659 = vmatprep.subr.mxu0 %v323
    %660 = vmatpush1.msra.mxu0 %v322
    %661 = vmatprep.subr.mxu0 %v332
    %662 = vmatpush1.msra.mxu0 %v331
    %663 = vmatprep.subr.mxu0 %v341
    %664 = vmatpush1.msra.mxu0 %v340
    %665 = vmatprep.subr.mxu0 %v350
    %666 = vmatpush1.msra.mxu0 %v349
    %667 = vmatprep.subr.mxu0 %v359
    %668 = vmatpush1.msra.mxu0 %v358
    %669 = vmatprep.subr.mxu0 %v368
    %670 = vmatpush1.msra.mxu0 %v367
    %671 = vmatprep.subr.mxu0 %v377
    %672 = vmatpush1.msra.mxu0 %v376
    %673 = vmatprep.subr.mxu0 %v386
    %674 = vmatpush1.msra.mxu0 %v385
    %675 = vmatprep.subr.mxu0 %v395
    %676 = vmatpush1.msra.mxu0 %v394
    %677 = vmatprep.subr.mxu0 %v404
    %678 = vmatpush1.msra.mxu0 %v403
    %679 = vmatprep.subr.mxu0 %v413
    %680 = vmatpush1.msra.mxu0 %v412
    %681 = vmatprep.subr.mxu0 %v422
    %682 = vmatpush1.msra.mxu0 %v421
    %683 = vmatprep.subr.mxu0 %v431
    %684 = vmatpush1.msra.mxu0 %v430
    %685 = vmatprep.subr.mxu0 %v440
    %686 = vmatpush1.msra.mxu0 %v439
    %687 = vmatprep.subr.mxu0 %v449
    %688 = vmatpush1.msra.mxu0 %v448
    %689 = vmatprep.subr.mxu0 %v458
    %690 = vmatpush1.msra.mxu0 %v457
    %691 = vmatprep.subr.mxu0 %v467
    %692 = vmatpush1.msra.mxu0 %v466
    %693 = vmatprep.subr.mxu0 %v476
    %694 = vmatpush1.msra.mxu0 %v475
    %695 = vmatprep.subr.mxu0 %v485
    %696 = vmatpush1.msra.mxu0 %v484
    %697 = vmatprep.subr.mxu0 %v494
    %698 = vmatpush1.msra.mxu0 %v493
    %699 = vmatprep.subr.mxu0 %v503
    %700 = vmatpush1.msra.mxu0 %v502
    %701 = vmatprep.subr.mxu0 %v512
    %702 = vmatpush1.msra.mxu0 %v511
    %703 = vmatprep.subr.mxu0 %v521
    %704 = vmatpush1.msra.mxu0 %v520
    %705 = vmatprep.subr.mxu0 %v530
    %706 = vmatpush1.msra.mxu0 %v529
    %707 = vmatprep.subr.mxu0 %v539
    %708 = vmatpush1.msra.mxu0 %v538
    %709 = vmatprep.subr.mxu0 %v548
    %710 = vmatpush1.msra.mxu0 %v547
    %711 = vmatprep.subr.mxu0 %v557
    %712 = vmatpush1.msra.mxu0 %v556
    %713 = vmatprep.subr.mxu0 %v566
    %714 = vmatpush1.msra.mxu0 %v565
    %715 = vmatprep.subr.mxu0 %v575
    %716 = vmatpush1.msra.mxu0 %v574
    %717 = vmatprep.subr.mxu0 %v584
    %718 = vmatpush1.msra.mxu0 %v583
    %719 = vmatprep.subr.mxu0 %v593
    %720 = vmatpush1.msra.mxu0 %v592
    %721 = vmatprep.subr.mxu0 %v602
    %722 = vmatpush1.msra.mxu0 %v601
    %723 = vmatprep.mubr.f32.mxu0 %v321
    %724 = vmatmul.mubr.f32.gmra.mrb[0].mxu0 %v320
    %v725 = vpop.f32.mrb[0].mxu0
    %v726 = vadd.f32 %v617, %v725
    %v727 = vpop.f32.mrb[0].mxu0
    %v728 = vadd.f32 %v621, %v727
    %729 = vdwg.mxu0
    %730 = vmatprep.subr.mxu0 %v325
    %731 = vmatpush1.msra.mxu0 %v324
    %732 = vmatprep.subr.mxu0 %v334
    %733 = vmatpush1.msra.mxu0 %v333
    %734 = vmatprep.subr.mxu0 %v343
    %735 = vmatpush1.msra.mxu0 %v342
    %736 = vmatprep.subr.mxu0 %v352
    %737 = vmatpush1.msra.mxu0 %v351
    %738 = vmatprep.subr.mxu0 %v361
    %739 = vmatpush1.msra.mxu0 %v360
    %740 = vmatprep.subr.mxu0 %v370
    %741 = vmatpush1.msra.mxu0 %v369
    %742 = vmatprep.subr.mxu0 %v379
    %743 = vmatpush1.msra.mxu0 %v378
    %744 = vmatprep.subr.mxu0 %v388
    %745 = vmatpush1.msra.mxu0 %v387
    %746 = vmatprep.subr.mxu0 %v397
    %747 = vmatpush1.msra.mxu0 %v396
    %748 = vmatprep.subr.mxu0 %v406
    %749 = vmatpush1.msra.mxu0 %v405
    %750 = vmatprep.subr.mxu0 %v415
    %751 = vmatpush1.msra.mxu0 %v414
    %752 = vmatprep.subr.mxu0 %v424
    %753 = vmatpush1.msra.mxu0 %v423
    %754 = vmatprep.subr.mxu0 %v433
    %755 = vmatpush1.msra.mxu0 %v432
    %756 = vmatprep.subr.mxu0 %v442
    %757 = vmatpush1.msra.mxu0 %v441
    %758 = vmatprep.subr.mxu0 %v451
    %759 = vmatpush1.msra.mxu0 %v450
    %760 = vmatprep.subr.mxu0 %v460
    %761 = vmatpush1.msra.mxu0 %v459
    %762 = vmatprep.subr.mxu0 %v469
    %763 = vmatpush1.msra.mxu0 %v468
    %764 = vmatprep.subr.mxu0 %v478
    %765 = vmatpush1.msra.mxu0 %v477
    %766 = vmatprep.subr.mxu0 %v487
    %767 = vmatpush1.msra.mxu0 %v486
    %768 = vmatprep.subr.mxu0 %v496
    %769 = vmatpush1.msra.mxu0 %v495
    %770 = vmatprep.subr.mxu0 %v505
    %771 = vmatpush1.msra.mxu0 %v504
    %772 = vmatprep.subr.mxu0 %v514
    %773 = vmatpush1.msra.mxu0 %v513
    %774 = vmatprep.subr.mxu0 %v523
    %775 = vmatpush1.msra.mxu0 %v522
    %776 = vmatprep.subr.mxu0 %v532
    %777 = vmatpush1.msra.mxu0 %v531
    %778 = vmatprep.subr.mxu0 %v541
    %779 = vmatpush1.msra.mxu0 %v540
    %780 = vmatprep.subr.mxu0 %v550
    %781 = vmatpush1.msra.mxu0 %v549
    %782 = vmatprep.subr.mxu0 %v559
    %783 = vmatpush1.msra.mxu0 %v558
    %784 = vmatprep.subr.mxu0 %v568
    %785 = vmatpush1.msra.mxu0 %v567
    %786 = vmatprep.subr.mxu0 %v577
    %787 = vmatpush1.msra.mxu0 %v576
    %788 = vmatprep.subr.mxu0 %v586
    %789 = vmatpush1.msra.mxu0 %v585
    %790 = vmatprep.subr.mxu0 %v595
    %791 = vmatpush1.msra.mxu0 %v594
    %792 = vmatprep.subr.mxu0 %v604
    %793 = vmatpush1.msra.mxu0 %v603
    %794 = vmatprep.mubr.f32.mxu0 %v321
    %795 = vmatmul.mubr.f32.gmra.mrb[0].mxu0 %v320
    %v796 = vpop.f32.mrb[0].mxu0
    %v797 = vadd.f32 %v625, %v796
    %v798 = vpop.f32.mrb[0].mxu0
    %v799 = vadd.f32 %v629, %v798
    %800 = vdwg.mxu0
    %801 = vmatprep.subr.mxu0 %v327
    %802 = vmatpush1.msra.mxu0 %v326
    %803 = vmatprep.subr.mxu0 %v336
    %804 = vmatpush1.msra.mxu0 %v335
    %805 = vmatprep.subr.mxu0 %v345
    %806 = vmatpush1.msra.mxu0 %v344
    %807 = vmatprep.subr.mxu0 %v354
    %808 = vmatpush1.msra.mxu0 %v353
    %809 = vmatprep.subr.mxu0 %v363
    %810 = vmatpush1.msra.mxu0 %v362
    %811 = vmatprep.subr.mxu0 %v372
    %812 = vmatpush1.msra.mxu0 %v371
    %813 = vmatprep.subr.mxu0 %v381
    %814 = vmatpush1.msra.mxu0 %v380
    %815 = vmatprep.subr.mxu0 %v390
    %816 = vmatpush1.msra.mxu0 %v389
    %817 = vmatprep.subr.mxu0 %v399
    %818 = vmatpush1.msra.mxu0 %v398
    %819 = vmatprep.subr.mxu0 %v408
    %820 = vmatpush1.msra.mxu0 %v407
    %821 = vmatprep.subr.mxu0 %v417
    %822 = vmatpush1.msra.mxu0 %v416
    %823 = vmatprep.subr.mxu0 %v426
    %824 = vmatpush1.msra.mxu0 %v425
    %825 = vmatprep.subr.mxu0 %v435
    %826 = vmatpush1.msra.mxu0 %v434
    %827 = vmatprep.subr.mxu0 %v444
    %828 = vmatpush1.msra.mxu0 %v443
    %829 = vmatprep.subr.mxu0 %v453
    %830 = vmatpush1.msra.mxu0 %v452
    %831 = vmatprep.subr.mxu0 %v462
    %832 = vmatpush1.msra.mxu0 %v461
    %833 = vmatprep.subr.mxu0 %v471
    %834 = vmatpush1.msra.mxu0 %v470
    %835 = vmatprep.subr.mxu0 %v480
    %836 = vmatpush1.msra.mxu0 %v479
    %837 = vmatprep.subr.mxu0 %v489
    %838 = vmatpush1.msra.mxu0 %v488
    %839 = vmatprep.subr.mxu0 %v498
    %840 = vmatpush1.msra.mxu0 %v497
    %841 = vmatprep.subr.mxu0 %v507
    %842 = vmatpush1.msra.mxu0 %v506
    %843 = vmatprep.subr.mxu0 %v516
    %844 = vmatpush1.msra.mxu0 %v515
    %845 = vmatprep.subr.mxu0 %v525
    %846 = vmatpush1.msra.mxu0 %v524
    %847 = vmatprep.subr.mxu0 %v534
    %848 = vmatpush1.msra.mxu0 %v533
    %849 = vmatprep.subr.mxu0 %v543
    %850 = vmatpush1.msra.mxu0 %v542
    %851 = vmatprep.subr.mxu0 %v552
    %852 = vmatpush1.msra.mxu0 %v551
    %853 = vmatprep.subr.mxu0 %v561
    %854 = vmatpush1.msra.mxu0 %v560
    %855 = vmatprep.subr.mxu0 %v570
    %856 = vmatpush1.msra.mxu0 %v569
    %857 = vmatprep.subr.mxu0 %v579
    %858 = vmatpush1.msra.mxu0 %v578
    %859 = vmatprep.subr.mxu0 %v588
    %860 = vmatpush1.msra.mxu0 %v587
    %861 = vmatprep.subr.mxu0 %v597
    %862 = vmatpush1.msra.mxu0 %v596
    %863 = vmatprep.subr.mxu0 %v606
    %864 = vmatpush1.msra.mxu0 %v605
    %865 = vmatprep.mubr.f32.mxu0 %v321
    %866 = vmatmul.mubr.f32.gmra.mrb[0].mxu0 %v320
    %v867 = vpop.f32.mrb[0].mxu0
    %v868 = vadd.f32 %v633, %v867
    %v869 = vpop.f32.mrb[0].mxu0
    %v870 = vadd.f32 %v637, %v869
    %871 = vdwg.mxu0
    %872 = vmatprep.subr.mxu0 %v329
    %873 = vmatpush1.msra.mxu0 %v328
    %874 = vmatprep.subr.mxu0 %v338
    %875 = vmatpush1.msra.mxu0 %v337
    %876 = vmatprep.subr.mxu0 %v347
    %877 = vmatpush1.msra.mxu0 %v346
    %878 = vmatprep.subr.mxu0 %v356
    %879 = vmatpush1.msra.mxu0 %v355
    %880 = vmatprep.subr.mxu0 %v365
    %881 = vmatpush1.msra.mxu0 %v364
    %882 = vmatprep.subr.mxu0 %v374
    %883 = vmatpush1.msra.mxu0 %v373
    %884 = vmatprep.subr.mxu0 %v383
    %885 = vmatpush1.msra.mxu0 %v382
    %886 = vmatprep.subr.mxu0 %v392
    %887 = vmatpush1.msra.mxu0 %v391
    %888 = vmatprep.subr.mxu0 %v401
    %889 = vmatpush1.msra.mxu0 %v400
    %890 = vmatprep.subr.mxu0 %v410
    %891 = vmatpush1.msra.mxu0 %v409
    %892 = vmatprep.subr.mxu0 %v419
    %893 = vmatpush1.msra.mxu0 %v418
    %894 = vmatprep.subr.mxu0 %v428
    %895 = vmatpush1.msra.mxu0 %v427
    %896 = vmatprep.subr.mxu0 %v437
    %897 = vmatpush1.msra.mxu0 %v436
    %898 = vmatprep.subr.mxu0 %v446
    %899 = vmatpush1.msra.mxu0 %v445
    %900 = vmatprep.subr.mxu0 %v455
    %901 = vmatpush1.msra.mxu0 %v454
    %902 = vmatprep.subr.mxu0 %v464
    %903 = vmatpush1.msra.mxu0 %v463
    %904 = vmatprep.subr.mxu0 %v473
    %905 = vmatpush1.msra.mxu0 %v472
    %906 = vmatprep.subr.mxu0 %v482
    %907 = vmatpush1.msra.mxu0 %v481
    %908 = vmatprep.subr.mxu0 %v491
    %909 = vmatpush1.msra.mxu0 %v490
    %910 = vmatprep.subr.mxu0 %v500
    %911 = vmatpush1.msra.mxu0 %v499
    %912 = vmatprep.subr.mxu0 %v509
    %913 = vmatpush1.msra.mxu0 %v508
    %914 = vmatprep.subr.mxu0 %v518
    %915 = vmatpush1.msra.mxu0 %v517
    %916 = vmatprep.subr.mxu0 %v527
    %917 = vmatpush1.msra.mxu0 %v526
    %918 = vmatprep.subr.mxu0 %v536
    %919 = vmatpush1.msra.mxu0 %v535
    %920 = vmatprep.subr.mxu0 %v545
    %921 = vmatpush1.msra.mxu0 %v544
    %922 = vmatprep.subr.mxu0 %v554
    %923 = vmatpush1.msra.mxu0 %v553
    %924 = vmatprep.subr.mxu0 %v563
    %925 = vmatpush1.msra.mxu0 %v562
    %926 = vmatprep.subr.mxu0 %v572
    %927 = vmatpush1.msra.mxu0 %v571
    %928 = vmatprep.subr.mxu0 %v581
    %929 = vmatpush1.msra.mxu0 %v580
    %930 = vmatprep.subr.mxu0 %v590
    %931 = vmatpush1.msra.mxu0 %v589
    %932 = vmatprep.subr.mxu0 %v599
    %933 = vmatpush1.msra.mxu0 %v598
    %934 = vmatprep.subr.mxu0 %v608
    %935 = vmatpush1.msra.mxu0 %v607
    %936 = vmatprep.mubr.f32.mxu0 %v321
    %937 = vmatmul.mubr.f32.gmra.mrb[0].mxu0 %v320
    %v938 = vpop.f32.mrb[0].mxu0
    %v939 = vadd.f32 %v641, %v938
    %v940 = vpop.f32.mrb[0].mxu0
    %v941 = vadd.f32 %v645, %v940
    %942 = vdwg.mxu0
    %943 = vmatprep.subr.mxu0 0.0
    %944 = vmatpush1.msra.mxu0 %v330
    %945 = vmatprep.subr.mxu0 0.0
    %946 = vmatpush1.msra.mxu0 %v339
    %947 = vmatprep.subr.mxu0 0.0
    %948 = vmatpush1.msra.mxu0 %v348
    %949 = vmatprep.subr.mxu0 0.0
    %950 = vmatpush1.msra.mxu0 %v357
    %951 = vmatprep.subr.mxu0 0.0
    %952 = vmatpush1.msra.mxu0 %v366
    %953 = vmatprep.subr.mxu0 0.0
    %954 = vmatpush1.msra.mxu0 %v375
    %955 = vmatprep.subr.mxu0 0.0
    %956 = vmatpush1.msra.mxu0 %v384
    %957 = vmatprep.subr.mxu0 0.0
    %958 = vmatpush1.msra.mxu0 %v393
    %959 = vmatprep.subr.mxu0 0.0
    %960 = vmatpush1.msra.mxu0 %v402
    %961 = vmatprep.subr.mxu0 0.0
    %962 = vmatpush1.msra.mxu0 %v411
    %963 = vmatprep.subr.mxu0 0.0
    %964 = vmatpush1.msra.mxu0 %v420
    %965 = vmatprep.subr.mxu0 0.0
    %966 = vmatpush1.msra.mxu0 %v429
    %967 = vmatprep.subr.mxu0 0.0
    %968 = vmatpush1.msra.mxu0 %v438
    %969 = vmatprep.subr.mxu0 0.0
    %970 = vmatpush1.msra.mxu0 %v447
    %971 = vmatprep.subr.mxu0 0.0
    %972 = vmatpush1.msra.mxu0 %v456
    %973 = vmatprep.subr.mxu0 0.0
    %974 = vmatpush1.msra.mxu0 %v465
    %975 = vmatprep.subr.mxu0 0.0
    %976 = vmatpush1.msra.mxu0 %v474
    %977 = vmatprep.subr.mxu0 0.0
    %978 = vmatpush1.msra.mxu0 %v483
    %979 = vmatprep.subr.mxu0 0.0
    %980 = vmatpush1.msra.mxu0 %v492
    %981 = vmatprep.subr.mxu0 0.0
    %982 = vmatpush1.msra.mxu0 %v501
    %983 = vmatprep.subr.mxu0 0.0
    %984 = vmatpush1.msra.mxu0 %v510
    %985 = vmatprep.subr.mxu0 0.0
    %986 = vmatpush1.msra.mxu0 %v519
    %987 = vmatprep.subr.mxu0 0.0
    %988 = vmatpush1.msra.mxu0 %v528
    %989 = vmatprep.subr.mxu0 0.0
    %990 = vmatpush1.msra.mxu0 %v537
    %991 = vmatprep.subr.mxu0 0.0
    %992 = vmatpush1.msra.mxu0 %v546
    %993 = vmatprep.subr.mxu0 0.0
    %994 = vmatpush1.msra.mxu0 %v555
    %995 = vmatprep.subr.mxu0 0.0
    %996 = vmatpush1.msra.mxu0 %v564
    %997 = vmatprep.subr.mxu0 0.0
    %998 = vmatpush1.msra.mxu0 %v573
    %999 = vmatprep.subr.mxu0 0.0
    %1000 = vmatpush1.msra.mxu0 %v582
    %1001 = vmatprep.subr.mxu0 0.0
    %1002 = vmatpush1.msra.mxu0 %v591
    %1003 = vmatprep.subr.mxu0 0.0
    %1004 = vmatpush1.msra.mxu0 %v600
    %1005 = vmatprep.subr.mxu0 0.0
    %1006 = vmatpush1.msra.mxu0 %v609
    %1007 = vmatprep.mubr.f32.mxu0 %v321
    %1008 = vmatmul.mubr.f32.gmra.mrb[0].mxu0 %v320
    %v1009 = vpop.f32.mrb[0].mxu0
    %v1010 = vadd.f32 %v649, %v1009
    %v1011 = vpop.f32.mrb[0].mxu0
    %1012 = vdwg.mxu0
    %v1013 = vxor.u32 %v726, 2147483648
    %v1014 = vxor.u32 %v728, 2147483648
    %v1015 = vxor.u32 %v797, 2147483648
    %v1016 = vxor.u32 %v799, 2147483648
    %v1017 = vxor.u32 %v868, 2147483648
    %v1018 = vxor.u32 %v870, 2147483648
    %v1019 = vxor.u32 %v939, 2147483648
    %v1020 = vxor.u32 %v941, 2147483648
    %v1021 = vxor.u32 %v1010, 2147483648
    %v1022 = vmul.f32 %v1013, 1.442695
    %v1023 = vpow.pop %v1022
    %v1024 = vmul.f32 %v1014, 1.442695
    %v1025 = vpow.pop %v1024
    %v1026 = vmul.f32 %v1015, 1.442695
    %v1027 = vpow.pop %v1026
    %v1028 = vmul.f32 %v1016, 1.442695
    %v1029 = vpow.pop %v1028
    %v1030 = vmul.f32 %v1017, 1.442695
    %v1031 = vpow.pop %v1030
    %v1032 = vmul.f32 %v1018, 1.442695
    %v1033 = vpow.pop %v1032
    %v1034 = vmul.f32 %v1019, 1.442695
    %v1035 = vpow.pop %v1034
    %v1036 = vmul.f32 %v1020, 1.442695
    %v1037 = vpow.pop %v1036
    %v1038 = vmul.f32 %v1021, 1.442695
    %v1039 = vpow.pop %v1038
    %v1040 = vadd.f32 %v1023, 1.0
    %v1041 = vadd.f32 %v1025, 1.0
    %v1042 = vadd.f32 %v1027, 1.0
    %v1043 = vadd.f32 %v1029, 1.0
    %v1044 = vadd.f32 %v1031, 1.0
    %v1045 = vadd.f32 %v1033, 1.0
    %v1046 = vadd.f32 %v1035, 1.0
    %v1047 = vadd.f32 %v1037, 1.0
    %v1048 = vadd.f32 %v1039, 1.0
    %v1049 = vrcp.pop %v1040
    %v1050 = vmul.f32 1.0, %v1049
    %v1051 = vrcp.pop %v1041
    %v1052 = vmul.f32 1.0, %v1051
    %v1053 = vrcp.pop %v1042
    %v1054 = vmul.f32 1.0, %v1053
    %v1055 = vrcp.pop %v1043
    %v1056 = vmul.f32 1.0, %v1055
    %v1057 = vrcp.pop %v1044
    %v1058 = vmul.f32 1.0, %v1057
    %v1059 = vrcp.pop %v1045
    %v1060 = vmul.f32 1.0, %v1059
    %v1061 = vrcp.pop %v1046
    %v1062 = vmul.f32 1.0, %v1061
    %v1063 = vrcp.pop %v1047
    %v1064 = vmul.f32 1.0, %v1063
    %v1065 = vrcp.pop %v1048
    %v1066 = vmul.f32 1.0, %v1065
    %1067 = vst [vmem:[#allocation14] sm:$0xff] %v1050
    %1068 = vst [vmem:[#allocation14 + $0x8] sm:$0xff] %v1052
    %1069 = vst [vmem:[#allocation14 + $0x10] sm:$0xff] %v1054
    %1070 = vst [vmem:[#allocation14 + $0x18] sm:$0xff] %v1056
    %1071 = vst [vmem:[#allocation14 + $0x20] sm:$0xff] %v1058
    %1072 = vst [vmem:[#allocation14 + $0x28] sm:$0xff] %v1060
    %1073 = vst [vmem:[#allocation14 + $0x30] sm:$0xff] %v1062
    %1074 = vst [vmem:[#allocation14 + $0x38] sm:$0xff] %v1064
    %1075 = vst [vmem:[#allocation14 + $0x40] sm:$0xff] %v1066
    // Predicated region
    $region58: #{decoder_forward.1} parent=1 // pred_check
      _
    $region59: #{decoder_forward.1} parent=1 // pred_check_branch
      %1077 = sbr.rel (0) target = $region61
    $region60: #{decoder_forward.1} parent=1 // pred_region
      %s1079 = ssub.s32 1152, 1152
      %1080 = vsyncadd [#allocation4], %s1079
      %s1082 = sshll.u32 [#allocation14], 4
      %s1083 = int_to_ptr.vmem [resolvable:$true] %s1082
      %1085 = dma.vmem_to_hbm [thread:$0]  %s1083, 1152, %s7, [#allocation4]
    $region61: #{decoder_forward.1} parent=1 // pred_fallthru
      _
    // Predicated region
    $region62: #{decoder_forward.1} parent=1 // pred_check
      _
    $region63: #{decoder_forward.1} parent=1 // pred_check_branch
      %1087 = sbr.rel (0) target = $region65
    $region64: #{decoder_forward.1} parent=1 // pred_region
      %1088 = dma.done [#allocation4], 1152
    $region65: #{decoder_forward.1} parent=1 // pred_fallthru
      _
    %1089 = vsyncpa [#allocation3], 1
    %1090 = vsyncpa [#allocation6], 1
    %1091 = vsyncpa [#allocation9], 1
    %1092 = vsyncpa [#allocation12], 1
    %1093 = vsyncpa [#allocation4], 1

</llo_original>
